<compile_context>
chip_gen: v7x
topology: tpu7x:2x2x1
jax: 0.10.0
libtpu: 0.0.40
codegen_flags: <defaults>
</compile_context>

<pallas_src>
import jax
import jax.numpy as jnp
from jax.experimental import pallas as pl
from jax.experimental.pallas import tpu as pltpu


def _round_up(n, m):
    return ((n + m - 1) // m) * m


# --------------------------------------------------------------------------
# Kernels
# --------------------------------------------------------------------------
def _encode_kernel(x_ref, eps_ref, ew_ref, eb_ref, hw_ref, hb_ref,
                   mulv_ref, z_ref, acc_ref):
    """grid = (batch tiles, V contraction tiles)."""
    v = pl.program_id(1)

    @pl.when(v == 0)
    def _init():
        acc_ref[...] = jnp.zeros_like(acc_ref)

    # partial contraction over this V tile (bf16 operands, f32 accumulate)
    acc_ref[...] += jnp.dot(x_ref[...], ew_ref[...],
                            preferred_element_type=jnp.float32)

    @pl.when(v == pl.num_programs(1) - 1)
    def _finish():
        hid = jnp.maximum(acc_ref[...] + eb_ref[...], 0.0)        # (tb, H) f32
        # fused fc_mu / fc_logvar: single (H, 2*Kp) matmul
        mulv = jnp.dot(hid.astype(jnp.bfloat16), hw_ref[...],
                       preferred_element_type=jnp.float32) + hb_ref[...]
        kp = z_ref.shape[-1]
        mu = mulv[:, :kp]
        logvar = mulv[:, kp:]
        mulv_ref[...] = mulv
        # reparameterize: z_ = mu + eps * exp(logvar / 2)
        z_ref[...] = mu + eps_ref[...] * jnp.exp(logvar * 0.5)


def _decode_kernel(z_ref, cmax_ref, inv_ref, d0w_ref, d0b_ref, d1w_ref, d1b_ref,
                   xr_ref, h_ref):
    """grid = (batch tiles, V output tiles)."""
    @pl.when(pl.program_id(1) == 0)
    def _dec0():
        # batch-axis softmax using pre-computed per-topic stats (exact divide)
        z = jnp.exp(z_ref[...] - cmax_ref[...]) * inv_ref[...]     # (tb, Kp)
        h = jnp.dot(z.astype(jnp.bfloat16), d0w_ref[...],
                    preferred_element_type=jnp.float32) + d0b_ref[...]
        h_ref[...] = jnp.maximum(h, 0.0).astype(h_ref.dtype)       # bf16 scratch

    # dec1 over this V tile (lane-dense output store)
    xr_ref[...] = (jnp.dot(h_ref[...], d1w_ref[...],
                           preferred_element_type=jnp.float32)
                   + d1b_ref[...]).astype(xr_ref.dtype)


# --------------------------------------------------------------------------
# Wrapper
# --------------------------------------------------------------------------
def avitm_forward(x, eps, params, *, block_b=256, block_v=512,
                  x_rec_dtype=jnp.float32):
    """AVITM forward. x: (B, V) f32, eps: (B, K) f32 -> (x_reconst, mu, logvar)."""
    B, V = x.shape
    K = eps.shape[1]
    H = params["enc_w"].shape[1]

    f32, bf16 = jnp.float32, jnp.bfloat16

    # ---- tile sizes ------------------------------------------------------
    # batch tile: multiple of 16 (bf16 sublane packing); target >= 2 tiles so
    # both v7x TensorCores get work on the "parallel" batch axis.
    tb = max(16, min(block_b, _round_up(-(-B // 2), 16)))
    Bp = _round_up(B, tb)
    nbt = Bp // tb

    Kp = _round_up(K, 128)                         # lane-dense topic width
    tV = min(_round_up(block_v, 128), _round_up(V, 128))
    Vp = _round_up(V, tV)                          # vocab padded to tile multiple
    nvt = Vp // tV

    # ---- pad / cast inputs & weights --------------------------------------
    def pad2(a, rows, cols):
        return jnp.pad(a, ((0, rows - a.shape[0]), (0, cols - a.shape[1])))

    x_bf = pad2(x, Bp, Vp).astype(bf16)
    eps_f = pad2(eps, Bp, Kp).astype(f32)

    enc_w = pad2(params["enc_w"], Vp, H).astype(bf16)
    enc_b = params["enc_b"].reshape(1, H).astype(f32)
    mulv_w = jnp.concatenate(
        [pad2(params["mu_w"], H, Kp), pad2(params["lv_w"], H, Kp)],
        axis=1).astype(bf16)                                   # (H, 2*Kp)
    mulv_b = jnp.concatenate(
        [pad2(params["mu_b"].reshape(1, K), 1, Kp),
         pad2(params["lv_b"].reshape(1, K), 1, Kp)], axis=1).astype(f32)
    d0_w = pad2(params["dec0_w"], Kp, H).astype(bf16)
    d0_b = params["dec0_b"].reshape(1, H).astype(f32)
    d1_w = pad2(params["dec1_w"], H, Vp).astype(bf16)
    d1_b = pad2(params["dec1_b"].reshape(1, V), 1, Vp).astype(f32)

    def _vmem_limit(terms):
        return min(int(sum(terms) * 1.25) + (2 << 20), 100 * 1024 * 1024)

    # ---- kernel 1: encode (V contraction) + fused heads + reparameterize ----
    enc_vmem = _vmem_limit([
        2 * tb * tV * 2,          # x tile (bf16, double buffered)
        2 * tb * Kp * 4,          # eps tile
        2 * tV * H * 2,           # enc_w tile
        2 * H * 4,                # enc_b
        2 * H * (2 * Kp) * 2,     # fused head weights
        2 * (2 * Kp) * 4,         # fused head bias
        2 * tb * (2 * Kp) * 4,    # mulv out
        2 * tb * Kp * 4,          # z_ out
        tb * H * 4,               # accumulator scratch
    ])
    enc_cost = pl.CostEstimate(
        flops=int(2 * Bp * Vp * H + 2 * Bp * H * 2 * Kp),
        transcendentals=int(Bp * Kp),
        bytes_accessed=int(Bp * Vp * 2 + Bp * Kp * 4 + Vp * H * 2
                           + H * 2 * Kp * 2 + Bp * 2 * Kp * 4 + Bp * Kp * 4),
    )
    mulv, z_ = pl.pallas_call(
        _encode_kernel,
        grid=(nbt, nvt),
        in_specs=[
            pl.BlockSpec((tb, tV), lambda i, v: (i, v)),       # x tile
            pl.BlockSpec((tb, Kp), lambda i, v: (i, 0)),       # eps tile
            pl.BlockSpec((tV, H), lambda i, v: (v, 0)),        # enc_w tile
            pl.BlockSpec((1, H), lambda i, v: (0, 0)),         # enc_b
            pl.BlockSpec((H, 2 * Kp), lambda i, v: (0, 0)),    # fused head W
            pl.BlockSpec((1, 2 * Kp), lambda i, v: (0, 0)),    # fused head b
        ],
        out_specs=(pl.BlockSpec((tb, 2 * Kp), lambda i, v: (i, 0)),
                   pl.BlockSpec((tb, Kp), lambda i, v: (i, 0))),
        out_shape=(jax.ShapeDtypeStruct((Bp, 2 * Kp), f32),
                   jax.ShapeDtypeStruct((Bp, Kp), f32)),
        scratch_shapes=[pltpu.VMEM((tb, H), jnp.float32)],
        compiler_params=pltpu.CompilerParams(
            dimension_semantics=("parallel", "arbitrary"),
            vmem_limit_bytes=enc_vmem),
        cost_estimate=enc_cost,
    )(x_bf, eps_f, enc_w, enc_b, mulv_w, mulv_b)

    # ---- batch-axis softmax statistics (computed ONCE, exact) ------------
    # softmax over dim=0, matching the PyTorch forward; padded batch rows are
    # excluded from the statistics.
    z_valid = z_[:B]
    colmax = jnp.max(z_valid, axis=0, keepdims=True)           # (1, Kp)
    inv = 1.0 / jnp.sum(jnp.exp(z_valid - colmax), axis=0, keepdims=True)

    # ---- kernel 2: softmax apply + decode (V as output-N grid axis) -------
    dec_vmem = _vmem_limit([
        2 * tb * Kp * 4,          # z_ tile
        2 * Kp * 4 * 2,           # colmax + inv
        2 * Kp * H * 2,           # dec0 W
        2 * H * 4,                # dec0 b
        2 * H * tV * 2,           # dec1 W tile
        2 * tV * 4,               # dec1 b tile
        2 * tb * tV * jnp.dtype(x_rec_dtype).itemsize,   # x_rec tile
        tb * H * 2,               # hidden scratch (bf16)
    ])
    dec_cost = pl.CostEstimate(
        flops=int(2 * Bp * Kp * H + 2 * Bp * H * Vp),
        transcendentals=int(Bp * Kp),
        bytes_accessed=int(Bp * Kp * 4 + Kp * H * 2 + H * Vp * 2
                           + Bp * Vp * jnp.dtype(x_rec_dtype).itemsize),
    )
    x_rec = pl.pallas_call(
        _decode_kernel,
        grid=(nbt, nvt),
        in_specs=[
            pl.BlockSpec((tb, Kp), lambda i, j: (i, 0)),       # z_ tile
            pl.BlockSpec((1, Kp), lambda i, j: (0, 0)),        # colmax
            pl.BlockSpec((1, Kp), lambda i, j: (0, 0)),        # 1 / colsum
            pl.BlockSpec((Kp, H), lambda i, j: (0, 0)),        # dec0 W
            pl.BlockSpec((1, H), lambda i, j: (0, 0)),         # dec0 b
            pl.BlockSpec((H, tV), lambda i, j: (0, j)),        # dec1 W tile
            pl.BlockSpec((1, tV), lambda i, j: (0, j)),        # dec1 b tile
        ],
        out_specs=pl.BlockSpec((tb, tV), lambda i, j: (i, j)),
        out_shape=jax.ShapeDtypeStruct((Bp, Vp), x_rec_dtype),
        scratch_shapes=[pltpu.VMEM((tb, H), jnp.bfloat16)],
        compiler_params=pltpu.CompilerParams(
            dimension_semantics=("parallel", "arbitrary"),
            vmem_limit_bytes=dec_vmem),
        cost_estimate=dec_cost,
    )(z_, colmax, inv, d0_w, d0_b, d1_w, d1_b)

    mu = mulv[:B, :K]
    logvar = mulv[:B, Kp:Kp + K]
    return x_rec[:B, :V], mu, logvar


# --------------------------------------------------------------------------
# Param init (PyTorch nn.Linear-style: U(-1/sqrt(fan_in), 1/sqrt(fan_in)))
# --------------------------------------------------------------------------
def init_params(key, V, H, K):
    ks = jax.random.split(key, 10)

    def lin(kw, kb, fan_in, fan_out):
        bound = 1.0 / jnp.sqrt(jnp.float32(fan_in))
        w = jax.random.uniform(kw, (fan_in, fan_out), jnp.float32, -bound, bound)
        b = jax.random.uniform(kb, (1, fan_out), jnp.float32, -bound, bound)
        return w, b

    enc_w, enc_b = lin(ks[0], ks[1], V, H)
    mu_w, mu_b = lin(ks[2], ks[3], H, K)
    lv_w, lv_b = lin(ks[4], ks[5], H, K)
    dec0_w, dec0_b = lin(ks[6], ks[7], K, H)
    dec1_w, dec1_b = lin(ks[8], ks[9], H, V)
    return dict(enc_w=enc_w, enc_b=enc_b, mu_w=mu_w, mu_b=mu_b,
                lv_w=lv_w, lv_b=lv_b, dec0_w=dec0_w, dec0_b=dec0_b,
                dec1_w=dec1_w, dec1_b=dec1_b)


# --------------------------------------------------------------------------
# Self-test
# --------------------------------------------------------------------------
if __name__ == "__main__":
    # Small AVITM: encode_dims=[V,H,K], decode_dims=[K,H,V]
    # B not a multiple of the batch tile and V not a multiple of 128 so the
    # padding / masking / V-tiling paths are all exercised (nbt=2, nvt=2).
    B, V, H, K = 24, 200, 32, 16

    root = jax.random.PRNGKey(0)
    k_x, k_eps, k_par = jax.random.split(root, 3)

    x = jax.random.uniform(k_x, (B, V), jnp.float32, 0.0, 1.0)  # BoW-like input
    eps = jax.random.normal(k_eps, (B, K), jnp.float32)
    params = init_params(k_par, V, H, K)

    x_reconst, mu, logvar = avitm_forward(x, eps, params, block_b=16, block_v=128)
    jax.block_until_ready((x_reconst, mu, logvar))

    # Pure-JAX reference mirroring the kernel numerics (bf16 matmul operands,
    # f32 accumulation; exact softmax over dim=0; dropout = identity).
    def mm(a, w):
        return jnp.dot(a.astype(jnp.bfloat16), w.astype(jnp.bfloat16),
                       preferred_element_type=jnp.float32)

    hid = jnp.maximum(mm(x, params["enc_w"]) + params["enc_b"], 0.0)
    mu_r = mm(hid, params["mu_w"]) + params["mu_b"]
    lv_r = mm(hid, params["lv_w"]) + params["lv_b"]
    z_r = mu_r + eps * jnp.exp(lv_r * 0.5)
    z = jax.nn.softmax(z_r, axis=0)                      # batch-axis softmax
    h = jnp.maximum(mm(z, params["dec0_w"]) + params["dec0_b"], 0.0)
    xr_r = mm(h, params["dec1_w"]) + params["dec1_b"]

    assert bool(jnp.allclose(mu, mu_r, atol=1e-4, rtol=1e-4)), "mu mismatch"
    assert bool(jnp.allclose(logvar, lv_r, atol=1e-4, rtol=1e-4)), "logvar mismatch"
    assert bool(jnp.allclose(x_reconst, xr_r, atol=2e-3, rtol=2e-3)), "x_reconst mismatch"

    print("KERNEL_OK")
</pallas_src>

<mosaic_0001>
module attributes {stable_mosaic.version = 11 : i64} {
  func.func @_encode_kernel(%arg0: i32, %arg1: i32, %arg2: memref<16x128xbf16, #tpu.memory_space<vmem>>, %arg3: memref<16x128xf32, #tpu.memory_space<vmem>>, %arg4: memref<128x32xbf16, #tpu.memory_space<vmem>>, %arg5: memref<1x32xf32, #tpu.memory_space<vmem>>, %arg6: memref<32x256xbf16, #tpu.memory_space<vmem>>, %arg7: memref<1x256xf32, #tpu.memory_space<vmem>>, %arg8: memref<16x256xf32, #tpu.memory_space<vmem>>, %arg9: memref<16x128xf32, #tpu.memory_space<vmem>>, %arg10: memref<16x32xf32, #tpu.memory_space<vmem>>) attributes {dimension_semantics = [#tpu.dimension_semantics<parallel>, #tpu.dimension_semantics<arbitrary>], iteration_bounds = array<i64: 2, 2>, scalar_prefetch = 0 : i64, scratch_operands = 1 : i64, tpu.core_type = #tpu.core_type<tc>, window_params = [{transform_indices = @transform_0, window_bounds = array<i64: 16, 128>}, {transform_indices = @transform_1, window_bounds = array<i64: 16, 128>}, {transform_indices = @transform_2, window_bounds = array<i64: 128, 32>}, {pipeline_mode = #tpu.pipeline_mode<synchronous>, transform_indices = @transform_3, window_bounds = array<i64: 1, 32>}, {pipeline_mode = #tpu.pipeline_mode<synchronous>, transform_indices = @transform_4, window_bounds = array<i64: 32, 256>}, {pipeline_mode = #tpu.pipeline_mode<synchronous>, transform_indices = @transform_5, window_bounds = array<i64: 1, 256>}, {transform_indices = @transform_6, window_bounds = array<i64: 16, 256>}, {transform_indices = @transform_7, window_bounds = array<i64: 16, 128>}]} {
    %c0_i32 = arith.constant 0 : i32
    %0 = arith.cmpi eq, %arg1, %c0_i32 : i32
    %1 = arith.extui %0 : i1 to i32
    %c0_i32_0 = arith.constant 0 : i32
    %2 = arith.cmpi ne, %1, %c0_i32_0 : i32
    scf.if %2 {
      %cst_9 = arith.constant 0.000000e+00 : f32
      %12 = vector.broadcast %cst_9 : f32 to vector<16x32xf32>
      %c0_10 = arith.constant 0 : index
      %c0_11 = arith.constant 0 : index
      %13 = vector.load %arg10[%c0_10, %c0_11] : memref<16x32xf32, #tpu.memory_space<vmem>>, vector<16x32xf32>
      tpu.vector_store %arg10[%c0_10, %c0_11], %12 {strides = array<i32>} : memref<16x32xf32, #tpu.memory_space<vmem>>, vector<16x32xf32>,
    } else {
    }
    %c0 = arith.constant 0 : index
    %c0_1 = arith.constant 0 : index
    %3 = vector.load %arg10[%c0, %c0_1] : memref<16x32xf32, #tpu.memory_space<vmem>>, vector<16x32xf32>
    %c0_2 = arith.constant 0 : index
    %c0_3 = arith.constant 0 : index
    %4 = vector.load %arg2[%c0_2, %c0_3] : memref<16x128xbf16, #tpu.memory_space<vmem>>, vector<16x128xbf16>
    %c0_4 = arith.constant 0 : index
    %c0_5 = arith.constant 0 : index
    %5 = vector.load %arg4[%c0_4, %c0_5] : memref<128x32xbf16, #tpu.memory_space<vmem>>, vector<128x32xbf16>
    %cst = arith.constant dense<0.000000e+00> : vector<16x32xf32>
    %6 = tpu.matmul %4, %5, %cst {dimension_numbers = #tpu.dot_dimension_numbers<[1], [0], [0], [1], [0, 0, 1, 1], [], []>} : vector<16x128xbf16>, vector<128x32xbf16>, vector<16x32xf32> -> vector<16x32xf32>
    %7 = arith.addf %3, %6 : vector<16x32xf32>
    %c0_6 = arith.constant 0 : index
    %c0_7 = arith.constant 0 : index
    %8 = vector.load %arg10[%c0_6, %c0_7] : memref<16x32xf32, #tpu.memory_space<vmem>>, vector<16x32xf32>
    tpu.vector_store %arg10[%c0_6, %c0_7], %7 {strides = array<i32>} : memref<16x32xf32, #tpu.memory_space<vmem>>, vector<16x32xf32>,
    %c1_i32 = arith.constant 1 : i32
    %9 = arith.cmpi eq, %arg1, %c1_i32 : i32
    %10 = arith.extui %9 : i1 to i32
    %c0_i32_8 = arith.constant 0 : i32
    %11 = arith.cmpi ne, %10, %c0_i32_8 : i32
    scf.if %11 {
      %c0_9 = arith.constant 0 : index
      %c0_10 = arith.constant 0 : index
      %12 = vector.load %arg10[%c0_9, %c0_10] : memref<16x32xf32, #tpu.memory_space<vmem>>, vector<16x32xf32>
      %c0_11 = arith.constant 0 : index
      %c0_12 = arith.constant 0 : index
      %13 = vector.load %arg5[%c0_11, %c0_12] : memref<1x32xf32, #tpu.memory_space<vmem>>, vector<1x32xf32>
      %14 = vector.broadcast %13 : vector<1x32xf32> to vector<16x32xf32>
      %15 = arith.addf %12, %14 : vector<16x32xf32>
      %cst_13 = arith.constant 0.000000e+00 : f32
      %16 = vector.broadcast %cst_13 : f32 to vector<16x32xf32>
      %17 = arith.maximumf %15, %16 : vector<16x32xf32>
      %18 = arith.truncf %17 : vector<16x32xf32> to vector<16x32xbf16>
      %c0_14 = arith.constant 0 : index
      %c0_15 = arith.constant 0 : index
      %19 = vector.load %arg6[%c0_14, %c0_15] : memref<32x256xbf16, #tpu.memory_space<vmem>>, vector<32x256xbf16>
      %cst_16 = arith.constant dense<0.000000e+00> : vector<16x256xf32>
      %20 = tpu.matmul %18, %19, %cst_16 {dimension_numbers = #tpu.dot_dimension_numbers<[1], [0], [0], [1], [0, 0, 1, 1], [], []>} : vector<16x32xbf16>, vector<32x256xbf16>, vector<16x256xf32> -> vector<16x256xf32>
      %c0_17 = arith.constant 0 : index
      %c0_18 = arith.constant 0 : index
      %21 = vector.load %arg7[%c0_17, %c0_18] : memref<1x256xf32, #tpu.memory_space<vmem>>, vector<1x256xf32>
      %22 = vector.broadcast %21 : vector<1x256xf32> to vector<16x256xf32>
      %23 = arith.addf %20, %22 : vector<16x256xf32>
      %24 = vector.extract_strided_slice %23 {offsets = [0, 0], sizes = [16, 128], strides = [1, 1]} : vector<16x256xf32> to vector<16x128xf32>
      %25 = vector.extract_strided_slice %23 {offsets = [0, 128], sizes = [16, 128], strides = [1, 1]} : vector<16x256xf32> to vector<16x128xf32>
      %c0_19 = arith.constant 0 : index
      %c0_20 = arith.constant 0 : index
      %26 = vector.load %arg8[%c0_19, %c0_20] : memref<16x256xf32, #tpu.memory_space<vmem>>, vector<16x256xf32>
      tpu.vector_store %arg8[%c0_19, %c0_20], %23 {strides = array<i32>} : memref<16x256xf32, #tpu.memory_space<vmem>>, vector<16x256xf32>,
      %c0_21 = arith.constant 0 : index
      %c0_22 = arith.constant 0 : index
      %27 = vector.load %arg3[%c0_21, %c0_22] : memref<16x128xf32, #tpu.memory_space<vmem>>, vector<16x128xf32>
      %cst_23 = arith.constant 5.000000e-01 : f32
      %28 = vector.broadcast %cst_23 : f32 to vector<16x128xf32>
      %29 = arith.mulf %25, %28 : vector<16x128xf32>
      %30 = math.exp %29 : vector<16x128xf32>
      %31 = arith.mulf %27, %30 : vector<16x128xf32>
      %32 = arith.addf %24, %31 : vector<16x128xf32>
      %c0_24 = arith.constant 0 : index
      %c0_25 = arith.constant 0 : index
      %33 = vector.load %arg9[%c0_24, %c0_25] : memref<16x128xf32, #tpu.memory_space<vmem>>, vector<16x128xf32>
      tpu.vector_store %arg9[%c0_24, %c0_25], %32 {strides = array<i32>} : memref<16x128xf32, #tpu.memory_space<vmem>>, vector<16x128xf32>,
    } else {
    }
    return
  }
  func.func @transform_0(%arg0: i32, %arg1: i32) -> (i32, i32) {
    %c0_i32 = arith.constant 0 : i32
    return %arg0, %arg1 : i32, i32
  }
  func.func @transform_1(%arg0: i32, %arg1: i32) -> (i32, i32) {
    %c0_i32 = arith.constant 0 : i32
    %c0_i32_0 = arith.constant 0 : i32
    return %arg0, %c0_i32 : i32, i32
  }
  func.func @transform_2(%arg0: i32, %arg1: i32) -> (i32, i32) {
    %c0_i32 = arith.constant 0 : i32
    %c0_i32_0 = arith.constant 0 : i32
    return %arg1, %c0_i32 : i32, i32
  }
  func.func @transform_3(%arg0: i32, %arg1: i32) -> (i32, i32) {
    %c0_i32 = arith.constant 0 : i32
    %c0_i32_0 = arith.constant 0 : i32
    %c0_i32_1 = arith.constant 0 : i32
    return %c0_i32, %c0_i32_0 : i32, i32
  }
  func.func @transform_4(%arg0: i32, %arg1: i32) -> (i32, i32) {
    %c0_i32 = arith.constant 0 : i32
    %c0_i32_0 = arith.constant 0 : i32
    %c0_i32_1 = arith.constant 0 : i32
    return %c0_i32, %c0_i32_0 : i32, i32
  }
  func.func @transform_5(%arg0: i32, %arg1: i32) -> (i32, i32) {
    %c0_i32 = arith.constant 0 : i32
    %c0_i32_0 = arith.constant 0 : i32
    %c0_i32_1 = arith.constant 0 : i32
    return %c0_i32, %c0_i32_0 : i32, i32
  }
  func.func @transform_6(%arg0: i32, %arg1: i32) -> (i32, i32) {
    %c0_i32 = arith.constant 0 : i32
    %c0_i32_0 = arith.constant 0 : i32
    return %arg0, %c0_i32 : i32, i32
  }
  func.func @transform_7(%arg0: i32, %arg1: i32) -> (i32, i32) {
    %c0_i32 = arith.constant 0 : i32
    %c0_i32_0 = arith.constant 0 : i32
    return %arg0, %c0_i32 : i32, i32
  }
}

</mosaic_0001>

<llo_original>
// kernel: tpu_custom_call.1
$region0: #{tpu_custom_call.1}
  #allocation0 [shape = 'u32[]', space=smem, size = 0x4, offset = 0x4, fixed_abs, tag = 'smem constant byte address 0x4 - core index']
  #allocation1 [shape = 'u32[144,128]{1,0:T(1,128)}', space=vmem, size = 0x12000, scoped, tag = 'internal scratch']
  #allocation2 [shape = 'f32[16,32]{1,0:T(8,128)}', space=vmem, size = 0x2000, scoped, tag = 'scratch operand']
  %s0 = inlined_call_operand.vmem [shape: bf16[32,256], index: 0, kind: input, shape index: {}]
  %s1 = inlined_call_operand.vmem [shape: f32[32,128], index: 1, kind: input, shape index: {}]
  %s2 = inlined_call_operand.vmem [shape: bf16[256,32], index: 2, kind: input, shape index: {}]
  %s3 = inlined_call_operand.vmem [shape: f32[1,32], index: 3, kind: input, shape index: {}]
  %s4 = inlined_call_operand.vmem [shape: bf16[32,256], index: 4, kind: input, shape index: {}]
  %s5 = inlined_call_operand.vmem [shape: f32[1,256], index: 5, kind: input, shape index: {}]
  %s6 = inlined_call_operand.hbm [shape: f32[32,256], index: 6, kind: output, shape index: {0}]
  %s7 = inlined_call_operand.hbm [shape: f32[32,128], index: 7, kind: output, shape index: {1}]
  %8 = xla_tuple %s6, %s7
  %s9 = sld [smem:[#allocation0]]
  $region114: #{tpu_custom_call.1} parent=0
    _
  %s11 = ssub.s32 1, %s9
  %s12 = scalar_select 0, %s11, %s9
  $region1: #{tpu_custom_call.1} parent=0
    #allocation3 [shape = 'u8[8192]{0}', space=vmem, size = 0x2000, scoped, tag = 'input window, operand 0']
    #allocation4 [shape = 'u8[32768]{0}', space=vmem, size = 0x8000, scoped, tag = 'output window, operand 0']
    #allocation5 [shape = 's32[2]{0}', space=sflag, size = 0x8, scoped, tag = 'scoped memory for tpu_custom_call.1']
    #allocation6 [shape = 'u8[16384]{0}', space=vmem, size = 0x4000, scoped, tag = 'output window, operand 1']
    #allocation7 [shape = 's32[2]{0}', space=sflag, size = 0x8, scoped, tag = 'scoped memory for tpu_custom_call.1']
    %13 = vsyncpa [#allocation5], 0
    %s14 = scalar_lea.sflag [#allocation5], 1
    %15 = vsyncpa %s14, 0
    %16 = vsyncpa [#allocation7], 0
    %s17 = scalar_lea.sflag [#allocation7], 1
    %18 = vsyncpa %s17, 0
    loop: start=0, step=1, limit=6
    $region2: #{tpu_custom_call.1} parent=1 // loop_pre_header
      _
    $region3: #{tpu_custom_call.1} parent=1 // loop_header
      %s20 = sphi 0, %s24
      %p21 = scmp.ge.s32.totalorder %s20, 6
      %s27 = sphi 0, %s39
      %s28 = sphi 0, %s35
      %s29 = sphi 0, %s27
      %s30 = sphi 0, %s28
      %s31 = sphi 0, %s29
      %s32 = sphi 0, %s30
      %s44 = sphi 0, %s46
      %s47 = sphi 0, %s44
      %s48 = sphi 0, %s47
      %s64 = sphi 0, %s48
      %s70 = sphi 0, %s72
      %s73 = sphi 0, %s70
      %s74 = sphi 0, %s73
      %s90 = sphi 0, %s74
      %s96 = sphi 0, %s98
      %s99 = sphi 0, %s96
      %s100 = sphi 0, %s99
      %s116 = sphi 0, %s100
      %s120 = sphi 0, %s120
      %s122 = sphi 0, %s120
      %s123 = sphi 0, %s122
      %s137 = sphi 0, %s123
      %s141 = sphi 0, %s141
      %s143 = sphi 0, %s141
      %s144 = sphi 0, %s143
      %s158 = sphi 0, %s144
      %s162 = sphi 0, %s162
      %s164 = sphi 0, %s162
      %s165 = sphi 0, %s164
      %s179 = sphi 0, %s165
      %s185 = sphi 0, %s187
      %s188 = sphi 0, %s185
      %s189 = sphi 0, %s188
      %s205 = sphi 0, %s189
      %s211 = sphi 0, %s213
      %s214 = sphi 0, %s211
      %s215 = sphi 0, %s214
      %s231 = sphi 0, %s215
    $region4: #{tpu_custom_call.1} parent=1 // loop_header_branch
      %23 = sbr.rel (%p21) target = $region8
    $region5: #{tpu_custom_call.1} parent=1 // loop_body
      %s25 = ssub.s32 %s20, 1
      %s26 = ssub.s32 %s20, 2
      %s33 = sadd.s32 1, %s28
      %p34 = scmp.ge.s32.totalorder %s33, 2
      %s35 = scalar_select %p34, 0, %s33
      %s36 = sadd.s32 1, %s27
      %s37 = scalar_select %p34, %s36, %s27
      %p38 = scmp.ge.s32.totalorder %s37, 2
      %s39 = scalar_select %p38, 0, %s37
      %s40 = ssub.s32 %s27, %s39
      %s41 = ssub.s32 %s28, %s35
      %s42 = sor.u32 %s40, %s41
      %p43 = scmp.eq.s32.totalorder %s42, 0
      %s45 = sadd.s32 %s44, 1
      %s46 = scalar_select %p43, %s44, %s45
      %p49 = pneg %p43
      %p50 = scmp.eq.s32.totalorder %s20, 3
      %p51 = por %p49, %p50
      %p52 = scmp.ne.s32.totalorder %s44, %s47
      %p53 = scmp.eq.s32.totalorder %s20, 0
      %p54 = por %p52, %p53
      %p55 = scmp.ne.s32.totalorder %s44, %s47
      %p56 = scmp.eq.s32.totalorder %s25, 3
      %p57 = por %p55, %p56
      %p58 = scmp.ne.s32.totalorder %s47, %s48
      %p59 = scmp.eq.s32.totalorder %s25, 0
      %p60 = por %p58, %p59
      %p61 = scmp.ne.s32.totalorder %s47, %s48
      %p62 = scmp.eq.s32.totalorder %s26, 3
      %p63 = por %p61, %p62
      %p65 = scmp.ne.s32.totalorder %s48, %s64
      %p66 = scmp.eq.s32.totalorder %s26, 0
      %p67 = por %p65, %p66
      %s68 = ssub.s32 %s27, %s39
      %p69 = scmp.eq.s32.totalorder %s68, 0
      %s71 = sadd.s32 %s70, 1
      %s72 = scalar_select %p69, %s70, %s71
      %p75 = pneg %p69
      %p76 = scmp.eq.s32.totalorder %s20, 3
      %p77 = por %p75, %p76
      %p78 = scmp.ne.s32.totalorder %s70, %s73
      %p79 = scmp.eq.s32.totalorder %s20, 0
      %p80 = por %p78, %p79
      %p81 = scmp.ne.s32.totalorder %s70, %s73
      %p82 = scmp.eq.s32.totalorder %s25, 3
      %p83 = por %p81, %p82
      %p84 = scmp.ne.s32.totalorder %s73, %s74
      %p85 = scmp.eq.s32.totalorder %s25, 0
      %p86 = por %p84, %p85
      %p87 = scmp.ne.s32.totalorder %s73, %s74
      %p88 = scmp.eq.s32.totalorder %s26, 3
      %p89 = por %p87, %p88
      %p91 = scmp.ne.s32.totalorder %s74, %s90
      %p92 = scmp.eq.s32.totalorder %s26, 0
      %p93 = por %p91, %p92
      %s94 = ssub.s32 %s28, %s35
      %p95 = scmp.eq.s32.totalorder %s94, 0
      %s97 = sadd.s32 %s96, 1
      %s98 = scalar_select %p95, %s96, %s97
      %p101 = pneg %p95
      %p102 = scmp.eq.s32.totalorder %s20, 3
      %p103 = por %p101, %p102
      %p104 = scmp.ne.s32.totalorder %s96, %s99
      %p105 = scmp.eq.s32.totalorder %s20, 0
      %p106 = por %p104, %p105
      %p107 = scmp.ne.s32.totalorder %s96, %s99
      %p108 = scmp.eq.s32.totalorder %s25, 3
      %p109 = por %p107, %p108
      %p110 = scmp.ne.s32.totalorder %s99, %s100
      %p111 = scmp.eq.s32.totalorder %s25, 0
      %p112 = por %p110, %p111
      %p113 = scmp.ne.s32.totalorder %s99, %s100
      %p114 = scmp.eq.s32.totalorder %s26, 3
      %p115 = por %p113, %p114
      %p117 = scmp.ne.s32.totalorder %s100, %s116
      %p118 = scmp.eq.s32.totalorder %s26, 0
      %p119 = por %p117, %p118
      %s121 = sadd.s32 %s120, 1
      %p124 = scmp.eq.s32.totalorder %s20, 3
      %p125 = scmp.ne.s32.totalorder %s120, %s122
      %p126 = scmp.eq.s32.totalorder %s20, 0
      %p127 = por %p125, %p126
      %p128 = scmp.ne.s32.totalorder %s120, %s122
      %p129 = scmp.eq.s32.totalorder %s25, 3
      %p130 = por %p128, %p129
      %p131 = scmp.ne.s32.totalorder %s122, %s123
      %p132 = scmp.eq.s32.totalorder %s25, 0
      %p133 = por %p131, %p132
      %p134 = scmp.ne.s32.totalorder %s122, %s123
      %p135 = scmp.eq.s32.totalorder %s26, 3
      %p136 = por %p134, %p135
      %p138 = scmp.ne.s32.totalorder %s123, %s137
      %p139 = scmp.eq.s32.totalorder %s26, 0
      %p140 = por %p138, %p139
      %s142 = sadd.s32 %s141, 1
      %p145 = scmp.eq.s32.totalorder %s20, 3
      %p146 = scmp.ne.s32.totalorder %s141, %s143
      %p147 = scmp.eq.s32.totalorder %s20, 0
      %p148 = por %p146, %p147
      %p149 = scmp.ne.s32.totalorder %s141, %s143
      %p150 = scmp.eq.s32.totalorder %s25, 3
      %p151 = por %p149, %p150
      %p152 = scmp.ne.s32.totalorder %s143, %s144
      %p153 = scmp.eq.s32.totalorder %s25, 0
      %p154 = por %p152, %p153
      %p155 = scmp.ne.s32.totalorder %s143, %s144
      %p156 = scmp.eq.s32.totalorder %s26, 3
      %p157 = por %p155, %p156
      %p159 = scmp.ne.s32.totalorder %s144, %s158
      %p160 = scmp.eq.s32.totalorder %s26, 0
      %p161 = por %p159, %p160
      %s163 = sadd.s32 %s162, 1
      %p166 = scmp.eq.s32.totalorder %s20, 3
      %p167 = scmp.ne.s32.totalorder %s162, %s164
      %p168 = scmp.eq.s32.totalorder %s20, 0
      %p169 = por %p167, %p168
      %p170 = scmp.ne.s32.totalorder %s162, %s164
      %p171 = scmp.eq.s32.totalorder %s25, 3
      %p172 = por %p170, %p171
      %p173 = scmp.ne.s32.totalorder %s164, %s165
      %p174 = scmp.eq.s32.totalorder %s25, 0
      %p175 = por %p173, %p174
      %p176 = scmp.ne.s32.totalorder %s164, %s165
      %p177 = scmp.eq.s32.totalorder %s26, 3
      %p178 = por %p176, %p177
      %p180 = scmp.ne.s32.totalorder %s165, %s179
      %p181 = scmp.eq.s32.totalorder %s26, 0
      %p182 = por %p180, %p181
      %s183 = ssub.s32 %s27, %s39
      %p184 = scmp.eq.s32.totalorder %s183, 0
      %s186 = sadd.s32 %s185, 1
      %s187 = scalar_select %p184, %s185, %s186
      %p190 = pneg %p184
      %p191 = scmp.eq.s32.totalorder %s20, 3
      %p192 = por %p190, %p191
      %p193 = scmp.ne.s32.totalorder %s185, %s188
      %p194 = scmp.eq.s32.totalorder %s20, 0
      %p195 = por %p193, %p194
      %p196 = scmp.ne.s32.totalorder %s185, %s188
      %p197 = scmp.eq.s32.totalorder %s25, 3
      %p198 = por %p196, %p197
      %p199 = scmp.ne.s32.totalorder %s188, %s189
      %p200 = scmp.eq.s32.totalorder %s25, 0
      %p201 = por %p199, %p200
      %p202 = scmp.ne.s32.totalorder %s188, %s189
      %p203 = scmp.eq.s32.totalorder %s26, 3
      %p204 = por %p202, %p203
      %p206 = scmp.ne.s32.totalorder %s189, %s205
      %p207 = scmp.eq.s32.totalorder %s26, 0
      %p208 = por %p206, %p207
      %s209 = ssub.s32 %s27, %s39
      %p210 = scmp.eq.s32.totalorder %s209, 0
      %s212 = sadd.s32 %s211, 1
      %s213 = scalar_select %p210, %s211, %s212
      %p216 = pneg %p210
      %p217 = scmp.eq.s32.totalorder %s20, 3
      %p218 = por %p216, %p217
      %p219 = scmp.ne.s32.totalorder %s211, %s214
      %p220 = scmp.eq.s32.totalorder %s20, 0
      %p221 = por %p219, %p220
      %p222 = scmp.ne.s32.totalorder %s211, %s214
      %p223 = scmp.eq.s32.totalorder %s25, 3
      %p224 = por %p222, %p223
      %p225 = scmp.ne.s32.totalorder %s214, %s215
      %p226 = scmp.eq.s32.totalorder %s25, 0
      %p227 = por %p225, %p226
      %p228 = scmp.ne.s32.totalorder %s214, %s215
      %p229 = scmp.eq.s32.totalorder %s26, 3
      %p230 = por %p228, %p229
      %p232 = scmp.ne.s32.totalorder %s215, %s231
      %p233 = scmp.eq.s32.totalorder %s26, 0
      %p234 = por %p232, %p233
      %p235 = scmp.le.s32.totalorder 1, %s20
      %p236 = scmp.lt.s32.totalorder %s20, 5
      %p237 = pnand %p235, %p236
      %p238 = pneg %p237
      // Predicated region
      $region9: #{tpu_custom_call.1} parent=5 // pred_check
        _
      $region10: #{tpu_custom_call.1} parent=5 // pred_check_branch
        %240 = sbr.rel (%p237) target = $region12
      $region11: #{tpu_custom_call.1} parent=5 // pred_region
        %s241 = ssub.s32 %s20, 1
        // Predicated region
        $region13: #{tpu_custom_call.1} parent=11 // pred_check
          %p242 = pneg %p133
        $region14: #{tpu_custom_call.1} parent=11 // pred_check_branch
          %244 = sbr.rel (%p242) target = $region16
        $region15: #{tpu_custom_call.1} parent=11 // pred_region
          _
        $region16: #{tpu_custom_call.1} parent=11 // pred_fallthru
          _
        // Predicated region
        $region17: #{tpu_custom_call.1} parent=11 // pred_check
          %p245 = pneg %p154
        $region18: #{tpu_custom_call.1} parent=11 // pred_check_branch
          %247 = sbr.rel (%p245) target = $region20
        $region19: #{tpu_custom_call.1} parent=11 // pred_region
          _
        $region20: #{tpu_custom_call.1} parent=11 // pred_fallthru
          _
        // Predicated region
        $region21: #{tpu_custom_call.1} parent=11 // pred_check
          %p248 = pneg %p175
        $region22: #{tpu_custom_call.1} parent=11 // pred_check_branch
          %250 = sbr.rel (%p248) target = $region24
        $region23: #{tpu_custom_call.1} parent=11 // pred_region
          _
        $region24: #{tpu_custom_call.1} parent=11 // pred_fallthru
          _
      $region12: #{tpu_custom_call.1} parent=5 // pred_fallthru
        _
      %p251 = scmp.lt.s32.totalorder %s20, 4
      // Predicated region
      $region25: #{tpu_custom_call.1} parent=5 // pred_check
        %p252 = pneg %p251
      $region26: #{tpu_custom_call.1} parent=5 // pred_check_branch
        %254 = sbr.rel (%p252) target = $region28
      $region27: #{tpu_custom_call.1} parent=5 // pred_region
        // Predicated region
        $region29: #{tpu_custom_call.1} parent=27 // pred_check
          %p255 = pneg %p54
        $region30: #{tpu_custom_call.1} parent=27 // pred_check_branch
          %257 = sbr.rel (%p255) target = $region32
        $region31: #{tpu_custom_call.1} parent=27 // pred_region
          %s258 = sand.u32 %s44, 1
          %s259 = sand.u32 %s44, 1
          %s260 = smul.addr %s259, 8
          %s261 = scalar_lea.vmem [#allocation3], %s260
          %s262 = smul.u32 2, %s27
          %s263 = smul.addr %s262, 2
          %s264 = sadd.s32 %s28, %s263
          %s265 = smul.addr %s264, 4
          %s266 = scalar_lea.vmem %s0, %s265
          // Predicated region
          $region33: #{tpu_custom_call.1} parent=31 // pred_check
            _
          $region34: #{tpu_custom_call.1} parent=31 // pred_check_branch
            %268 = sbr.rel (0) target = $region36
          $region35: #{tpu_custom_call.1} parent=31 // pred_region
            // Predicated region
            $region37: #{tpu_custom_call.1} parent=35 // pred_check
              _
            $region38: #{tpu_custom_call.1} parent=35 // pred_check_branch
              %270 = sbr.rel target = $region40
            $region39: #{tpu_custom_call.1} parent=35 // pred_region
              // Predicated region
              $region52: #{tpu_custom_call.1} parent=39 // pred_check
                _
              $region53: #{tpu_custom_call.1} parent=39 // pred_check_branch
                %287 = sbr.rel (0) target = $region55
              $region54: #{tpu_custom_call.1} parent=39 // pred_region
                loop: start=0, step=1, limit=1
                $region56: #{tpu_custom_call.1} parent=54 // loop_pre_header
                  _
                $region57: #{tpu_custom_call.1} parent=54 // loop_header
                  %s289 = sphi 0, %s293
                  %p290 = scmp.ge.s32.totalorder %s289, 1
                  %s294 = sphi %s266, %s266
                  %s295 = sphi %s261, %s261
                $region58: #{tpu_custom_call.1} parent=54 // loop_header_branch
                  %292 = sbr.rel (%p290) target = $region62
                $region59: #{tpu_custom_call.1} parent=54 // loop_body
                  _
                $region60: #{tpu_custom_call.1} parent=54 // loop_footer
                  %s293 = sadd.s32 1, %s289
                $region61: #{tpu_custom_call.1} parent=54 // loop_footer_branch
                  %288 = sbr.rel target = $region57
                $region62: #{tpu_custom_call.1} parent=54 // loop_exit
                  _
                loop: start=0, step=1, limit=1
                $region63: #{tpu_custom_call.1} parent=54 // loop_pre_header
                  _
                $region64: #{tpu_custom_call.1} parent=54 // loop_header
                  %s298 = sphi 0, %s302
                  %p299 = scmp.ge.s32.totalorder %s298, 1
                  %s303 = sphi %s266, %s266
                  %s304 = sphi %s261, %s261
                $region65: #{tpu_custom_call.1} parent=54 // loop_header_branch
                  %301 = sbr.rel (%p299) target = $region69
                $region66: #{tpu_custom_call.1} parent=54 // loop_body
                  %v305 = vld [vmem:[%s303] sm:$0xf]
                  %306 = vst [vmem:[%s304] sm:$0xf] %v305
                  %v307 = vld [vmem:[%s303 + $0x8] sm:$0xf]
                  %308 = vst [vmem:[%s304 + $0x4] sm:$0xf] %v307
                $region67: #{tpu_custom_call.1} parent=54 // loop_footer
                  %s302 = sadd.s32 1, %s298
                $region68: #{tpu_custom_call.1} parent=54 // loop_footer_branch
                  %297 = sbr.rel target = $region64
                $region69: #{tpu_custom_call.1} parent=54 // loop_exit
                  _
              $region55: #{tpu_custom_call.1} parent=39 // pred_fallthru
                _
            $region40: #{tpu_custom_call.1} parent=35 // pred_fallthru
              _
            // Predicated region
            $region41: #{tpu_custom_call.1} parent=35 // pred_check
              _
            $region42: #{tpu_custom_call.1} parent=35 // pred_check_branch
              %272 = sbr.rel (0) target = $region44
            $region43: #{tpu_custom_call.1} parent=35 // pred_region
              loop: start=0, step=1, limit=1
              $region45: #{tpu_custom_call.1} parent=43 // loop_pre_header
                _
              $region46: #{tpu_custom_call.1} parent=43 // loop_header
                %s275 = sphi 0, %s279
                %p276 = scmp.ge.s32.totalorder %s275, 1
                %s280 = sphi %s266, %s266
                %s281 = sphi %s261, %s261
              $region47: #{tpu_custom_call.1} parent=43 // loop_header_branch
                %278 = sbr.rel (%p276) target = $region51
              $region48: #{tpu_custom_call.1} parent=43 // loop_body
                %v282 = vld [vmem:[%s280] sm:$0xf]
                %283 = vst [vmem:[%s281] sm:$0xf] %v282
                %v284 = vld [vmem:[%s280 + $0x8] sm:$0xf]
                %285 = vst [vmem:[%s281 + $0x4] sm:$0xf] %v284
              $region49: #{tpu_custom_call.1} parent=43 // loop_footer
                %s279 = sadd.s32 1, %s275
              $region50: #{tpu_custom_call.1} parent=43 // loop_footer_branch
                %274 = sbr.rel target = $region46
              $region51: #{tpu_custom_call.1} parent=43 // loop_exit
                _
            $region44: #{tpu_custom_call.1} parent=35 // pred_fallthru
              _
          $region36: #{tpu_custom_call.1} parent=31 // pred_fallthru
            _
          %309 = vnop
        $region32: #{tpu_custom_call.1} parent=27 // pred_fallthru
          _
        // Predicated region
        $region70: #{tpu_custom_call.1} parent=27 // pred_check
          %p310 = pneg %p80
        $region71: #{tpu_custom_call.1} parent=27 // pred_check_branch
          %312 = sbr.rel (%p310) target = $region73
        $region72: #{tpu_custom_call.1} parent=27 // pred_region
          %s313 = smul.u32 2, %s27
          %p314 = scmp.lt.s32.totalorder %s313, 3
          %s315 = scalar_select %p314, %s313, 3
          %s316 = smul.addr %s315, 8
          %s317 = scalar_lea.vmem %s1, %s316
          %s318 = smul.u32 2, %s27
        $region73: #{tpu_custom_call.1} parent=27 // pred_fallthru
          _
        // Predicated region
        $region74: #{tpu_custom_call.1} parent=27 // pred_check
          %p319 = pneg %p106
        $region75: #{tpu_custom_call.1} parent=27 // pred_check_branch
          %321 = sbr.rel (%p319) target = $region77
        $region76: #{tpu_custom_call.1} parent=27 // pred_region
          %s322 = smul.u32 16, %s28
          %p323 = scmp.lt.s32.totalorder %s322, 31
          %s324 = scalar_select %p323, %s322, 31
          %s325 = smul.addr %s324, 4
          %s326 = scalar_lea.vmem %s2, %s325
          %s327 = smul.u32 16, %s28
        $region77: #{tpu_custom_call.1} parent=27 // pred_fallthru
          _
      $region28: #{tpu_custom_call.1} parent=5 // pred_fallthru
        _
      %p328 = scmp.le.s32.totalorder 1, %s20
      %p329 = scmp.lt.s32.totalorder %s20, 5
      %p330 = pnand %p328, %p329
      %p331 = pneg %p330
      // Predicated region
      $region78: #{tpu_custom_call.1} parent=5 // pred_check
        _
      $region79: #{tpu_custom_call.1} parent=5 // pred_check_branch
        %333 = sbr.rel (%p330) target = $region81
      $region80: #{tpu_custom_call.1} parent=5 // pred_region
        %s334 = ssub.s32 %s20, 1
        %s335 = sand.u32 %s47, 1
        %s336 = sand.u32 %s47, 1
        %s337 = smul.addr %s336, 8
        %s338 = scalar_lea.vmem [#allocation3], %s337
        // Predicated region
        $region82: #{tpu_custom_call.1} parent=80 // pred_check
          %p339 = pneg %p60
        $region83: #{tpu_custom_call.1} parent=80 // pred_check_branch
          %341 = sbr.rel (%p339) target = $region85
        $region84: #{tpu_custom_call.1} parent=80 // pred_region
          _
        $region85: #{tpu_custom_call.1} parent=80 // pred_fallthru
          _
        %s342 = sand.u32 %s47, 1
        %s343 = sand.u32 %s47, 1
        %s344 = smul.addr %s343, 8
        %s345 = scalar_lea.vmem [#allocation3], %s344
        %p346 = pneg %p60
        %p347 = pneg %p57
        %s348 = smul.u32 2, %s29
        %p349 = scmp.lt.s32.totalorder %s348, 3
        %s350 = scalar_select %p349, %s348, 3
        %s351 = smul.addr %s350, 8
        %s352 = scalar_lea.vmem %s1, %s351
        %p353 = pneg %p86
        %p354 = pneg %p83
        %s355 = smul.u32 16, %s30
        %p356 = scmp.lt.s32.totalorder %s355, 31
        %s357 = scalar_select %p356, %s355, 31
        %s358 = smul.addr %s357, 4
        %s359 = scalar_lea.vmem %s2, %s358
        %p360 = pneg %p112
        %p361 = pneg %p109
        %p362 = pneg %p133
        %p363 = pneg %p130
        %p364 = pneg %p154
        %p365 = pneg %p151
        %p366 = pneg %p175
        %p367 = pneg %p172
        %p368 = pneg %p201
        %p369 = pneg %p198
        %s370 = sand.u32 %s188, 1
        %s371 = scalar_lea.sflag [#allocation5], %s370
        %s372 = sand.u32 %s188, 1
        %s373 = smul.addr %s372, 32
        %s374 = scalar_lea.vmem [#allocation4], %s373
        %p375 = pneg %p227
        %p376 = pneg %p224
        %s377 = sand.u32 %s214, 1
        %s378 = scalar_lea.sflag [#allocation7], %s377
        %s379 = sand.u32 %s214, 1
        %s380 = smul.addr %s379, 16
        %s381 = scalar_lea.vmem [#allocation6], %s380
        %s382 = smul.u32 2, %s29
        %s383 = smul.u32 2, %s29
        %p384 = scmp.lt.s32.totalorder %s383, 3
        %s385 = scalar_select %p384, %s383, 3
        %s386 = smul.addr %s385, 8
        %s387 = scalar_lea.vmem %s1, %s386
        %s388 = smul.u32 2, %s29
        %s389 = smul.u32 16, %s30
        %p390 = scmp.lt.s32.totalorder %s389, 31
        %s391 = scalar_select %p390, %s389, 31
        %s392 = smul.addr %s391, 4
        %s393 = scalar_lea.vmem %s2, %s392
        %s394 = smul.u32 16, %s30
        %s395 = smul.u32 2, %s29
        %s396 = smul.u32 2, %s29
        %p398 = scmp.eq.s32.totalorder %s30, 0
        // Predicated region
        $region86: #{tpu_custom_call.1} parent=80 // pred_check
          %p399 = pneg %p398
        $region87: #{tpu_custom_call.1} parent=80 // pred_check_branch
          %401 = sbr.rel (%p399) target = $region89
        $region88: #{tpu_custom_call.1} parent=80 // pred_region
          %vm402 = vcmask 261120
          %403 = vst.msk [vmem:[#allocation2] sm:$0xff] %vm402, 0.0
          %404 = vst.msk [vmem:[#allocation2 + $0x8] sm:$0xff] %vm402, 0.0
        $region89: #{tpu_custom_call.1} parent=80 // pred_fallthru
          _
        %v405 = vld [vmem:[#allocation2] sm:$0xff]
        %v406 = vld [vmem:[#allocation2 + $0x8] sm:$0xff]
        %v407 = vld [vmem:[%s338] sm:$0xf]
        %v408 = vld [vmem:[%s338 + $0x4] sm:$0xf]
        %v409 = vld [vmem:[%s393] sm:$0xf]
        %v410 = vld [vmem:[%s393 + $0x4] sm:$0xf]
        %v411 = vld [vmem:[%s393 + $0x8] sm:$0xf]
        %v412 = vld [vmem:[%s393 + $0xc] sm:$0xf]
        %v413 = vld [vmem:[%s393 + $0x10] sm:$0xf]
        %v414 = vld [vmem:[%s393 + $0x14] sm:$0xf]
        %v415 = vld [vmem:[%s393 + $0x18] sm:$0xf]
        %v416 = vld [vmem:[%s393 + $0x1c] sm:$0xf]
        %v417 = vld [vmem:[%s393 + $0x20] sm:$0xf]
        %v418 = vld [vmem:[%s393 + $0x24] sm:$0xf]
        %v419 = vld [vmem:[%s393 + $0x28] sm:$0xf]
        %v420 = vld [vmem:[%s393 + $0x2c] sm:$0xf]
        %v421 = vld [vmem:[%s393 + $0x30] sm:$0xf]
        %v422 = vld [vmem:[%s393 + $0x34] sm:$0xf]
        %v423 = vld [vmem:[%s393 + $0x38] sm:$0xf]
        %v424 = vld [vmem:[%s393 + $0x3c] sm:$0xf]
        %v427 = vunpack.c.l.b16 %v407
        %v428 = vunpack.c.l.b16 %v408
        %v429 = vpack.c.b16 %v428, %v427
        %v447 = vunpack.c.l.b16 %v409
        %v448 = vunpack.c.l.b16 %v410
        %v449 = vunpack.c.l.b16 %v411
        %v450 = vunpack.c.l.b16 %v412
        %v451 = vunpack.c.l.b16 %v413
        %v452 = vunpack.c.l.b16 %v414
        %v453 = vunpack.c.l.b16 %v415
        %v454 = vunpack.c.l.b16 %v416
        %v455 = vunpack.c.l.b16 %v417
        %v456 = vunpack.c.l.b16 %v418
        %v457 = vunpack.c.l.b16 %v419
        %v458 = vunpack.c.l.b16 %v420
        %v459 = vunpack.c.l.b16 %v421
        %v460 = vunpack.c.l.b16 %v422
        %v461 = vunpack.c.l.b16 %v423
        %v462 = vunpack.c.l.b16 %v424
        %v463 = vpack.c.b16 %v448, %v447
        %v464 = vpack.c.b16 %v450, %v449
        %v465 = vpack.c.b16 %v452, %v451
        %v466 = vpack.c.b16 %v454, %v453
        %v467 = vpack.c.b16 %v456, %v455
        %v468 = vpack.c.b16 %v458, %v457
        %v469 = vpack.c.b16 %v460, %v459
        %v470 = vpack.c.b16 %v462, %v461
        %479 = vmatprep.subr.bf16.mxu0 0
        %480 = vmatpush1.bf16.msra.mxu0 %v463
        %481 = vmatprep.subr.bf16.mxu0 0
        %482 = vmatpush1.bf16.msra.mxu0 %v464
        %483 = vmatprep.subr.bf16.mxu0 0
        %484 = vmatpush1.bf16.msra.mxu0 %v465
        %485 = vmatprep.subr.bf16.mxu0 0
        %486 = vmatpush1.bf16.msra.mxu0 %v466
        %487 = vmatprep.subr.bf16.mxu0 0
        %488 = vmatpush1.bf16.msra.mxu0 %v467
        %489 = vmatprep.subr.bf16.mxu0 0
        %490 = vmatpush1.bf16.msra.mxu0 %v468
        %491 = vmatprep.subr.bf16.mxu0 0
        %492 = vmatpush1.bf16.msra.mxu0 %v469
        %493 = vmatprep.subr.bf16.mxu0 0
        %494 = vmatpush1.bf16.msra.mxu0 %v470
        %495 = vmatprep.subr.bf16.mxu0 0
        %496 = vmatpush1.bf16.msra.mxu0 0
        %497 = vmatprep.subr.bf16.mxu0 0
        %498 = vmatpush1.bf16.msra.mxu0 0
        %499 = vmatprep.subr.bf16.mxu0 0
        %500 = vmatpush1.bf16.msra.mxu0 0
        %501 = vmatprep.subr.bf16.mxu0 0
        %502 = vmatpush1.bf16.msra.mxu0 0
        %503 = vmatprep.subr.bf16.mxu0 0
        %504 = vmatpush1.bf16.msra.mxu0 0
        %505 = vmatprep.subr.bf16.mxu0 0
        %506 = vmatpush1.bf16.msra.mxu0 0
        %507 = vmatprep.subr.bf16.mxu0 0
        %508 = vmatpush1.bf16.msra.mxu0 0
        %509 = vmatprep.subr.bf16.mxu0 0
        %510 = vmatpush1.bf16.msra.mxu0 0
        %511 = vmatprep.mubr.bf16.mxu0 0
        %512 = vmatmul.mubr.bf16.gmra.mrb[0].mxu0 %v429
        %v513 = vpop.f32.mrb[0].mxu0
        %v514 = vadd.f32 0.0, %v513
        %v515 = vpop.f32.mrb[0].mxu0
        %v516 = vpop.f32.mrb[0].mxu0
        %v517 = vadd.f32 0.0, %v516
        %v518 = vpop.f32.mrb[0].mxu0
        %519 = vdwg.mxu0
        %v520 = vadd.f32 %v405, %v514
        %v521 = vadd.f32 %v406, %v517
        %vm522 = vcmask 261120
        %523 = vst.msk [vmem:[#allocation2] sm:$0xff] %vm522, %v520
        %524 = vst.msk [vmem:[#allocation2 + $0x8] sm:$0xff] %vm522, %v521
        %p525 = scmp.eq.s32.totalorder %s30, 1
        // Predicated region
        $region90: #{tpu_custom_call.1} parent=80 // pred_check
          %p526 = pneg %p525
        $region91: #{tpu_custom_call.1} parent=80 // pred_check_branch
          %528 = sbr.rel (%p526) target = $region93
        $region92: #{tpu_custom_call.1} parent=80 // pred_region
          %v529 = vld [vmem:[#allocation2] sm:$0xff]
          %v530 = vld [vmem:[#allocation2 + $0x8] sm:$0xff]
          %v531 = vld [vmem:[%s3] sm:$0x1]
          %v533 = vlaneseq
          %v534 = vshrl.u32 %v533, 7
          %v535 = vsub.s32 0, %v534
          %v536 = vrot.slane %v531, %v535
          %v538 = vadd.f32 %v529, %v536
          %v539 = vadd.f32 %v530, %v536
          %v540 = vmax.f32 %v538, 0.0
          %v541 = vmax.f32 %v539, 0.0
          %v542 = vpack.c.bf16 %v541, %v540
          %v543 = vld [vmem:[%s4] sm:$0xff]
          %v544 = vld [vmem:[%s4 + $0x8] sm:$0xff]
          %v545 = vld [vmem:[%s4 + $0x10] sm:$0xff]
          %v546 = vld [vmem:[%s4 + $0x18] sm:$0xff]
          %v547 = vld [vmem:[%s5] sm:$0x3]
          %v549 = vlaneseq
          %v550 = vshrl.u32 %v549, 7
          %v551 = vsub.s32 0, %v550
          %v552 = vrot.slane %v547, %v551
          %v553 = vlaneseq
          %v554 = vshrl.u32 %v553, 7
          %v555 = vsub.s32 1, %v554
          %v556 = vrot.slane %v547, %v555
          %v563 = vunpack.c.l.b16 %v543
          %v564 = vunpack.c.h.b16 %v543
          %v565 = vunpack.c.l.b16 %v544
          %v566 = vunpack.c.h.b16 %v544
          %v567 = vunpack.c.l.b16 %v545
          %v568 = vunpack.c.h.b16 %v545
          %v569 = vunpack.c.l.b16 %v546
          %v570 = vunpack.c.h.b16 %v546
          %v571 = vpack.c.b16 %v565, %v563
          %v572 = vpack.c.b16 %v566, %v564
          %v573 = vpack.c.b16 %v569, %v567
          %v574 = vpack.c.b16 %v570, %v568
          %v580 = vsel %vm522, %v542, 0
          %582 = vmatprep.subr.bf16.mxu0 %v572
          %583 = vmatpush1.bf16.msra.mxu0 %v571
          %584 = vmatprep.subr.bf16.mxu0 %v574
          %585 = vmatpush1.bf16.msra.mxu0 %v573
          %586 = vmatprep.subr.bf16.mxu0 0
          %587 = vmatpush1.bf16.msra.mxu0 0
          %588 = vmatprep.subr.bf16.mxu0 0
          %589 = vmatpush1.bf16.msra.mxu0 0
          %590 = vmatprep.subr.bf16.mxu0 0
          %591 = vmatpush1.bf16.msra.mxu0 0
          %592 = vmatprep.subr.bf16.mxu0 0
          %593 = vmatpush1.bf16.msra.mxu0 0
          %594 = vmatprep.subr.bf16.mxu0 0
          %595 = vmatpush1.bf16.msra.mxu0 0
          %596 = vmatprep.subr.bf16.mxu0 0
          %597 = vmatpush1.bf16.msra.mxu0 0
          %598 = vmatprep.subr.bf16.mxu0 0
          %599 = vmatpush1.bf16.msra.mxu0 0
          %600 = vmatprep.subr.bf16.mxu0 0
          %601 = vmatpush1.bf16.msra.mxu0 0
          %602 = vmatprep.subr.bf16.mxu0 0
          %603 = vmatpush1.bf16.msra.mxu0 0
          %604 = vmatprep.subr.bf16.mxu0 0
          %605 = vmatpush1.bf16.msra.mxu0 0
          %606 = vmatprep.subr.bf16.mxu0 0
          %607 = vmatpush1.bf16.msra.mxu0 0
          %608 = vmatprep.subr.bf16.mxu0 0
          %609 = vmatpush1.bf16.msra.mxu0 0
          %610 = vmatprep.subr.bf16.mxu0 0
          %611 = vmatpush1.bf16.msra.mxu0 0
          %612 = vmatprep.subr.bf16.mxu0 0
          %613 = vmatpush1.bf16.msra.mxu0 0
          %614 = vmatprep.mubr.bf16.mxu0 0
          %615 = vmatmul.mubr.bf16.gmra.mrb[0].mxu0 %v580
          %v616 = vpop.f32.mrb[0].mxu0
          %v617 = vadd.f32 %v552, %v616
          %v618 = vpop.f32.mrb[0].mxu0
          %v619 = vadd.f32 %v556, %v618
          %v620 = vpop.f32.mrb[0].mxu0
          %v621 = vadd.f32 %v552, %v620
          %v622 = vpop.f32.mrb[0].mxu0
          %v623 = vadd.f32 %v556, %v622
          %624 = vdwg.mxu0
          %625 = vst [vmem:[%s374] sm:$0xff] %v617
          %626 = vst [vmem:[%s374 + $0x8] sm:$0xff] %v619
          %627 = vst [vmem:[%s374 + $0x10] sm:$0xff] %v621
          %628 = vst [vmem:[%s374 + $0x18] sm:$0xff] %v623
          %v629 = vld [vmem:[%s387] sm:$0xff]
          %v630 = vld [vmem:[%s387 + $0x8] sm:$0xff]
          %v631 = vmul.f32 %v619, 0.5
          %v632 = vmul.f32 %v623, 0.5
          %v633 = vmul.f32 %v631, 1.442695
          %v634 = vpow.pop %v633
          %v635 = vmul.f32 %v632, 1.442695
          %v636 = vpow.pop %v635
          %v637 = vmul.f32 %v629, %v634
          %v638 = vmul.f32 %v630, %v636
          %v639 = vadd.f32 %v617, %v637
          %v640 = vadd.f32 %v621, %v638
          %641 = vst [vmem:[%s381] sm:$0xff] %v639
          %642 = vst [vmem:[%s381 + $0x8] sm:$0xff] %v640
        $region93: #{tpu_custom_call.1} parent=80 // pred_fallthru
          _
        %s643 = sand.u32 %s188, 1
        %s644 = scalar_lea.sflag [#allocation5], %s643
        %s645 = sand.u32 %s188, 1
        %s646 = smul.addr %s645, 32
        %s647 = scalar_lea.vmem [#allocation4], %s646
        %s648 = sand.u32 %s214, 1
        %s649 = scalar_lea.sflag [#allocation7], %s648
        %s650 = sand.u32 %s214, 1
        %s651 = smul.addr %s650, 16
        %s652 = scalar_lea.vmem [#allocation6], %s651
        // Predicated region
        $region94: #{tpu_custom_call.1} parent=80 // pred_check
          %p653 = pneg %p198
        $region95: #{tpu_custom_call.1} parent=80 // pred_check_branch
          %655 = sbr.rel (%p653) target = $region97
        $region96: #{tpu_custom_call.1} parent=80 // pred_region
          %s656 = smul.u32 2, %s29
          %s658 = ssub.s32 512, 512
          %659 = vsyncadd %s644, %s658
          %s660 = smul.addr %s656, 2
          %s661 = smul.addr %s660, 128
          %s662 = scalar_lea.hbm %s6, %s661
          %s663 = sshll.u32 %s647, 4
          %s664 = int_to_ptr.vmem [resolvable:$true] %s663
          %669 = dma.vmem_to_hbm [thread:$0]  %s664, 512, %s662, %s644, 256, 256, 16
        $region97: #{tpu_custom_call.1} parent=80 // pred_fallthru
          _
        // Predicated region
        $region98: #{tpu_custom_call.1} parent=80 // pred_check
          %p670 = pneg %p224
        $region99: #{tpu_custom_call.1} parent=80 // pred_check_branch
          %672 = sbr.rel (%p670) target = $region101
        $region100: #{tpu_custom_call.1} parent=80 // pred_region
          %s673 = smul.u32 2, %s29
          %s675 = ssub.s32 256, 256
          %676 = vsyncadd %s649, %s675
          %s677 = smul.addr %s673, 128
          %s678 = scalar_lea.hbm %s7, %s677
          %s679 = sshll.u32 %s652, 4
          %s680 = int_to_ptr.vmem [resolvable:$true] %s679
          %685 = dma.vmem_to_hbm [thread:$0]  %s680, 256, %s678, %s649, 128, 128, 8
        $region101: #{tpu_custom_call.1} parent=80 // pred_fallthru
          _
      $region81: #{tpu_custom_call.1} parent=5 // pred_fallthru
        _
      %p686 = scmp.le.s32.totalorder 2, %s20
      // Predicated region
      $region102: #{tpu_custom_call.1} parent=5 // pred_check
        %p687 = pneg %p686
      $region103: #{tpu_custom_call.1} parent=5 // pred_check_branch
        %689 = sbr.rel (%p687) target = $region105
      $region104: #{tpu_custom_call.1} parent=5 // pred_region
        %s690 = ssub.s32 %s20, 2
        // Predicated region
        $region106: #{tpu_custom_call.1} parent=104 // pred_check
          %p691 = pneg %p204
        $region107: #{tpu_custom_call.1} parent=104 // pred_check_branch
          %693 = sbr.rel (%p691) target = $region109
        $region108: #{tpu_custom_call.1} parent=104 // pred_region
          %s694 = sand.u32 %s189, 1
          %s695 = scalar_lea.sflag [#allocation5], %s694
          %s696 = sand.u32 %s189, 1
          %s697 = smul.addr %s696, 32
          %s698 = scalar_lea.vmem [#allocation4], %s697
          %699 = dma.done %s695, 512
        $region109: #{tpu_custom_call.1} parent=104 // pred_fallthru
          _
        // Predicated region
        $region110: #{tpu_custom_call.1} parent=104 // pred_check
          %p700 = pneg %p230
        $region111: #{tpu_custom_call.1} parent=104 // pred_check_branch
          %702 = sbr.rel (%p700) target = $region113
        $region112: #{tpu_custom_call.1} parent=104 // pred_region
          %s703 = sand.u32 %s215, 1
          %s704 = scalar_lea.sflag [#allocation7], %s703
          %s705 = sand.u32 %s215, 1
          %s706 = smul.addr %s705, 16
          %s707 = scalar_lea.vmem [#allocation6], %s706
          %708 = dma.done %s704, 256
        $region113: #{tpu_custom_call.1} parent=104 // pred_fallthru
          _
      $region105: #{tpu_custom_call.1} parent=5 // pred_fallthru
        _
    $region6: #{tpu_custom_call.1} parent=1 // loop_footer
      %s24 = sadd.s32 1, %s20
    $region7: #{tpu_custom_call.1} parent=1 // loop_footer_branch
      %19 = sbr.rel target = $region3
    $region8: #{tpu_custom_call.1} parent=1 // loop_exit
      _
    %709 = vsyncpa [#allocation5], 1
    %s710 = scalar_lea.sflag [#allocation5], 1
    %711 = vsyncpa %s710, 1
    %712 = vsyncpa [#allocation7], 1
    %s713 = scalar_lea.sflag [#allocation7], 1
    %714 = vsyncpa %s713, 1

</llo_original>
